<compile_context>
chip_gen: v5e
topology: v5e:2x2
jax: 0.10.0
libtpu: 0.0.40
codegen_flags: <defaults>
</compile_context>

<pallas_src>
import functools

import jax
import jax.numpy as jnp
from jax import lax
from jax.experimental import pallas as pl
from jax.experimental.pallas import tpu as pltpu


def _round_up(x, m):
    return (x + m - 1) // m * m


def _center_loss_block_kernel(x_ref, labels_ref, centers_ref, part_ref, *, batch_size):
    # x_ref:       (TB, D)  block of rows i*TB .. i*TB+TB-1 of x.
    # labels_ref:  (1, TB)  int32 labels for those rows (VMEM, lane-major).
    # centers_ref: (C, D)   full centers array, VMEM-resident across the grid.
    # part_ref:    (1, 128) lane-dense partial-sum output block for this step.
    i = pl.program_id(0)
    tb, _ = x_ref.shape
    c = centers_ref.shape[0]

    x = x_ref[...].astype(jnp.float32)               # (TB, D)
    centers = centers_ref[...].astype(jnp.float32)   # (C, D)
    lbl = labels_ref[...]                            # (1, TB) int32

    # One-hot gather of each row's center on the MXU.
    # onehot_t[c, r] = (labels[r] == c);  gathered = onehot_t.T @ centers.
    cls = lax.broadcasted_iota(jnp.int32, (c, tb), 0)            # class id / sublane
    onehot_t = (cls == jnp.broadcast_to(lbl, (c, tb))).astype(jnp.float32)
    gathered = lax.dot_general(
        onehot_t, centers,
        dimension_numbers=(((0,), (0,)), ((), ())),              # contract over C
        preferred_element_type=jnp.float32)                      # (TB, D)

    diff = x - gathered
    dist = jnp.sum(diff * diff, axis=-1, keepdims=True)          # (TB, 1)
    dist = jnp.clip(dist, 1e-12, 1e12)                           # torch .clamp per row

    # Mask rows past the real batch (tail padding of the last block).
    row = i * tb + lax.broadcasted_iota(jnp.int32, (tb, 1), 0)
    dist = jnp.where(row < batch_size, dist, 0.0)

    # Per-block partial sum, broadcast across 128 lanes -> unmasked vst.
    part_ref[...] = jnp.broadcast_to(jnp.sum(dist), part_ref.shape)


def center_loss(x, centers, labels, *, block_rows=512):
    """x: (B, D), centers: (C, D), labels: (B,) int -> scalar f32 loss."""
    B, D = x.shape
    C, Dc = centers.shape
    assert D == Dc

    # Clip labels for memory safety of the in-kernel gather (PyTorch would
    # raise an indexing error for out-of-range labels; here they are remapped).
    labels_i32 = jnp.clip(labels.astype(jnp.int32), 0, C - 1)

    # Row-block size: multiple of 8 sublanes, no bigger than the padded batch.
    tb = min(_round_up(block_rows, 8), _round_up(B, 8))
    b_pad = _round_up(B, tb)
    nb = b_pad // tb

    if b_pad != B:
        x_p = jnp.pad(x, ((0, b_pad - B), (0, 0)))
        labels_p = jnp.pad(labels_i32, (0, b_pad - B))
    else:
        x_p = x
        labels_p = labels_i32
    labels2d = labels_p.reshape(nb, tb)

    elem = jnp.dtype(x.dtype).itemsize
    # Resident centers + double-buffered x tiles + labels + output blocks.
    vmem_est = (C * D * elem
                + 2 * tb * D * elem
                + 2 * tb * 4
                + 2 * 128 * 4)
    compiler_kwargs = dict(dimension_semantics=("parallel",))
    if vmem_est > 24 * 1024 * 1024:
        compiler_kwargs["vmem_limit_bytes"] = int(min(2 * vmem_est, 100 * 1024 * 1024))

    cost = pl.CostEstimate(
        flops=2 * b_pad * C * D + 3 * b_pad * D,
        transcendentals=0,
        bytes_accessed=(b_pad * D + C * D) * elem + b_pad * 4 + nb * 128 * 4,
    )

    kernel = functools.partial(_center_loss_block_kernel, batch_size=B)

    parts = pl.pallas_call(
        kernel,
        out_shape=jax.ShapeDtypeStruct((nb, 128), jnp.float32),
        grid_spec=pltpu.PrefetchScalarGridSpec(
            num_scalar_prefetch=0,
            grid=(nb,),
            in_specs=[
                # x row block i
                pl.BlockSpec((tb, D), lambda i: (i, 0)),
                # labels for row block i
                pl.BlockSpec((1, tb), lambda i: (i, 0)),
                # full centers, constant block index -> DMA'd once, VMEM-resident
                pl.BlockSpec((C, D), lambda i: (0, 0)),
            ],
            out_specs=pl.BlockSpec((1, 128), lambda i: (i, 0)),
        ),
        compiler_params=pltpu.CompilerParams(**compiler_kwargs),
        cost_estimate=cost,
    )(x_p, labels2d, centers)

    # One clamped-distance partial sum per block; mean over the real batch.
    return jnp.sum(parts[:, 0]) / B


def _reference(x, centers, labels):
    # Pure-JAX reference using the original torch formulation
    # (full distmat, row select by label, clamp, mean).
    distmat = (jnp.sum(x * x, axis=1, keepdims=True)
               + jnp.sum(centers * centers, axis=1)[None, :]
               - 2.0 * x @ centers.T)
    sel = distmat[jnp.arange(x.shape[0]), labels]
    return jnp.mean(jnp.clip(sel, 1e-12, 1e12))


if __name__ == "__main__":
    # Small deterministic example consistent with CenterLoss_back(num_classes, feat_dim)
    num_classes = 16
    feat_dim = 32
    batch_size = 8

    key = jax.random.PRNGKey(0)
    k_x, k_c, k_l, k_x2, k_l2 = jax.random.split(key, 5)

    x = jax.random.normal(k_x, (batch_size, feat_dim), dtype=jnp.float32)
    # nn.Parameter(torch.randn(num_classes, feat_dim)) -> synthetic deterministic init
    centers = jax.random.normal(k_c, (num_classes, feat_dim), dtype=jnp.float32)
    labels = jax.random.randint(k_l, (batch_size,), 0, num_classes, dtype=jnp.int32)

    loss = center_loss(x, centers, labels)
    jax.block_until_ready(loss)
    ref = _reference(x, centers, labels)
    assert jnp.allclose(loss, ref, rtol=1e-4, atol=1e-5), (loss, ref)

    # Second case exercises a multi-block grid + ragged-tail masking.
    b2 = 100
    x2 = jax.random.normal(k_x2, (b2, feat_dim), dtype=jnp.float32)
    l2 = jax.random.randint(k_l2, (b2,), 0, num_classes, dtype=jnp.int32)
    loss2 = center_loss(x2, centers, l2, block_rows=32)
    jax.block_until_ready(loss2)
    ref2 = _reference(x2, centers, l2)
    assert jnp.allclose(loss2, ref2, rtol=1e-4, atol=1e-5), (loss2, ref2)

    print("KERNEL_OK")
</pallas_src>

<mosaic_0001>
module attributes {stable_mosaic.version = 11 : i64} {
  func.func @_center_loss_block_kernel(%arg0: i32, %arg1: memref<8x32xf32, #tpu.memory_space<vmem>>, %arg2: memref<1x8xi32, #tpu.memory_space<vmem>>, %arg3: memref<16x32xf32, #tpu.memory_space<vmem>>, %arg4: memref<1x128xf32, #tpu.memory_space<vmem>>) attributes {dimension_semantics = [#tpu.dimension_semantics<parallel>], iteration_bounds = array<i64: 1>, scalar_prefetch = 0 : i64, scratch_operands = 0 : i64, tpu.core_type = #tpu.core_type<tc>, window_params = [{transform_indices = @transform_0, window_bounds = array<i64: 8, 32>}, {transform_indices = @transform_1, window_bounds = array<i64: 1, 8>}, {pipeline_mode = #tpu.pipeline_mode<synchronous>, transform_indices = @transform_2, window_bounds = array<i64: 16, 32>}, {transform_indices = @transform_3, window_bounds = array<i64: 1, 128>}]} {
    %c0 = arith.constant 0 : index
    %c0_0 = arith.constant 0 : index
    %0 = vector.load %arg1[%c0, %c0_0] : memref<8x32xf32, #tpu.memory_space<vmem>>, vector<8x32xf32>
    %c0_1 = arith.constant 0 : index
    %c0_2 = arith.constant 0 : index
    %1 = vector.load %arg3[%c0_1, %c0_2] : memref<16x32xf32, #tpu.memory_space<vmem>>, vector<16x32xf32>
    %c0_3 = arith.constant 0 : index
    %c0_4 = arith.constant 0 : index
    %2 = vector.load %arg2[%c0_3, %c0_4] : memref<1x8xi32, #tpu.memory_space<vmem>>, vector<1x8xi32>
    %3 = tpu.iota {dimensions = array<i32: 0>} : vector<16x8xi32>
    %4 = vector.shape_cast %2 : vector<1x8xi32> to vector<1x8xi32>
    %5 = vector.broadcast %4 : vector<1x8xi32> to vector<16x8xi32>
    %6 = arith.cmpi eq, %3, %5 : vector<16x8xi32>
    %7 = arith.extui %6 : vector<16x8xi1> to vector<16x8xi32>
    %8 = arith.sitofp %7 : vector<16x8xi32> to vector<16x8xf32>
    %cst = arith.constant dense<0.000000e+00> : vector<8x32xf32>
    %9 = tpu.matmul %8, %1, %cst {dimension_numbers = #tpu.dot_dimension_numbers<[0], [0], [1], [1], [0, 1, 1, 1], [], []>} : vector<16x8xf32>, vector<16x32xf32>, vector<8x32xf32> -> vector<8x32xf32>
    %10 = arith.subf %0, %9 : vector<8x32xf32>
    %11 = arith.mulf %10, %10 : vector<8x32xf32>
    %cst_5 = arith.constant dense<0.000000e+00> : vector<8xf32>
    %12 = vector.multi_reduction <add>, %11, %cst_5 [1] : vector<8x32xf32> to vector<8xf32>
    %13 = vector.shape_cast %12 : vector<8xf32> to vector<8x1xf32>
    %cst_6 = arith.constant 9.99999996E-13 : f32
    %cst_7 = arith.constant 9.99999995E+11 : f32
    %14 = vector.broadcast %cst_6 : f32 to vector<8x1xf32>
    %15 = arith.maximumf %14, %13 : vector<8x1xf32>
    %16 = vector.broadcast %cst_7 : f32 to vector<8x1xf32>
    %17 = arith.minimumf %16, %15 : vector<8x1xf32>
    %c8_i32 = arith.constant 8 : i32
    %18 = arith.muli %arg0, %c8_i32 : i32
    %19 = tpu.iota {dimensions = array<i32: 0>} : vector<8x1xi32>
    %20 = vector.broadcast %18 : i32 to vector<8x1xi32>
    %21 = arith.addi %20, %19 : vector<8x1xi32>
    %c8_i32_8 = arith.constant 8 : i32
    %22 = vector.broadcast %c8_i32_8 : i32 to vector<8x1xi32>
    %23 = arith.cmpi slt, %21, %22 : vector<8x1xi32>
    %cst_9 = arith.constant 0.000000e+00 : f32
    %24 = vector.broadcast %cst_9 : f32 to vector<8x1xf32>
    %25 = arith.select %23, %17, %24 : vector<8x1xi1>, vector<8x1xf32>
    %26 = vector.shape_cast %25 : vector<8x1xf32> to vector<1x8x1xf32>
    %cst_10 = arith.constant dense<0.000000e+00> : vector<1xf32>
    %27 = vector.multi_reduction <add>, %26, %cst_10 [1, 2] : vector<1x8x1xf32> to vector<1xf32>
    %28 = vector.shape_cast %27 : vector<1xf32> to vector<1x1x1xf32>
    %29 = vector.extract %28[0, 0, 0] : f32 from vector<1x1x1xf32>
    %30 = vector.broadcast %29 : f32 to vector<1x128xf32>
    %c0_11 = arith.constant 0 : index
    %c0_12 = arith.constant 0 : index
    %31 = vector.load %arg4[%c0_11, %c0_12] : memref<1x128xf32, #tpu.memory_space<vmem>>, vector<1x128xf32>
    tpu.vector_store %arg4[%c0_11, %c0_12], %30 {strides = array<i32>} : memref<1x128xf32, #tpu.memory_space<vmem>>, vector<1x128xf32>,
    return
  }
  func.func @transform_0(%arg0: i32) -> (i32, i32) {
    %c0_i32 = arith.constant 0 : i32
    %c0_i32_0 = arith.constant 0 : i32
    return %arg0, %c0_i32 : i32, i32
  }
  func.func @transform_1(%arg0: i32) -> (i32, i32) {
    %c0_i32 = arith.constant 0 : i32
    %c0_i32_0 = arith.constant 0 : i32
    return %arg0, %c0_i32 : i32, i32
  }
  func.func @transform_2(%arg0: i32) -> (i32, i32) {
    %c0_i32 = arith.constant 0 : i32
    %c0_i32_0 = arith.constant 0 : i32
    %c0_i32_1 = arith.constant 0 : i32
    return %c0_i32, %c0_i32_0 : i32, i32
  }
  func.func @transform_3(%arg0: i32) -> (i32, i32) {
    %c0_i32 = arith.constant 0 : i32
    %c0_i32_0 = arith.constant 0 : i32
    return %arg0, %c0_i32 : i32, i32
  }
}

</mosaic_0001>

<llo_original>
// kernel: tpu_custom_call.1
$region0: #{tpu_custom_call.1}
  #allocation0 [shape = 'u32[]', space=smem, size = 0x4, offset = 0x4, fixed_abs, tag = 'smem constant byte address 0x4 - core index']
  #allocation1 [shape = 'u32[72,128]{1,0:T(1,128)}', space=vmem, size = 0x9000, scoped, tag = 'internal scratch']
  %s0 = inlined_call_operand.hbm [shape: f32[8,32], index: 0, kind: input, shape index: {}]
  %s1 = inlined_call_operand.hbm [shape: s32[1,8], index: 1, kind: input, shape index: {}]
  %s2 = inlined_call_operand.hbm [shape: f32[16,32], index: 2, kind: input, shape index: {}]
  %s3 = inlined_call_operand.hbm [shape: f32[1,128], index: 3, kind: output, shape index: {}]
  %s4 = sld [smem:[#allocation0]]
  $region34: #{tpu_custom_call.1} parent=0
    _
  %s6 = ssub.s32 1, %s4
  %s7 = scalar_select 0, %s6, %s4
  $region1: #{tpu_custom_call.1} parent=0
    #allocation2 [shape = 'u8[4096]{0}', space=vmem, size = 0x1000, scoped, tag = 'input window, operand 0, single buffered']
    #allocation3 [shape = 's32[1]{0}', space=sflag, size = 0x4, scoped, tag = 'scoped memory for tpu_custom_call.1']
    #allocation4 [shape = 's32[1]{0}', space=sflag, size = 0x4, scoped, tag = 'scoped memory for tpu_custom_call.1']
    #allocation5 [shape = 'u8[512]{0}', space=vmem, size = 0x400, scoped, tag = 'input window, operand 1, single buffered']
    #allocation6 [shape = 's32[1]{0}', space=sflag, size = 0x4, scoped, tag = 'scoped memory for tpu_custom_call.1']
    #allocation7 [shape = 'u8[8192]{0}', space=vmem, size = 0x2000, scoped, tag = 'input window, operand 2, single buffered']
    #allocation8 [shape = 'u8[512]{0}', space=vmem, size = 0x400, scoped, tag = 'output window, operand 0, single buffered']
    %8 = vsyncpa [#allocation3], 0
    %9 = vsyncpa [#allocation6], 0
    %10 = vsyncpa [#allocation4], 0
    // Predicated region
    $region2: #{tpu_custom_call.1} parent=1 // pred_check
      _
    $region3: #{tpu_custom_call.1} parent=1 // pred_check_branch
      %12 = sbr.rel (0) target = $region5
    $region4: #{tpu_custom_call.1} parent=1 // pred_region
      %14 = vsyncadd [#allocation3], 0
      %s16 = sshll.u32 %s0, 4
      %s17 = int_to_ptr.hbm [resolvable:$true] %s16
      %s18 = sshll.u32 [#allocation2], 4
      %s19 = int_to_ptr.vmem [resolvable:$true] %s18
      %21 = dma.hbm_to_vmem [thread:$0]  %s17, 128, %s19, [#allocation3]
    $region5: #{tpu_custom_call.1} parent=1 // pred_fallthru
      _
    // Predicated region
    $region6: #{tpu_custom_call.1} parent=1 // pred_check
      _
    $region7: #{tpu_custom_call.1} parent=1 // pred_check_branch
      %23 = sbr.rel (0) target = $region9
    $region8: #{tpu_custom_call.1} parent=1 // pred_region
      %25 = vsyncadd [#allocation6], 0
      %s27 = sshll.u32 %s1, 4
      %s28 = int_to_ptr.hbm [resolvable:$true] %s27
      %s29 = sshll.u32 [#allocation5], 4
      %s30 = int_to_ptr.vmem [resolvable:$true] %s29
      %32 = dma.hbm_to_vmem [thread:$0]  %s28, 16, %s30, [#allocation6]
    $region9: #{tpu_custom_call.1} parent=1 // pred_fallthru
      _
    // Predicated region
    $region10: #{tpu_custom_call.1} parent=1 // pred_check
      _
    $region11: #{tpu_custom_call.1} parent=1 // pred_check_branch
      %34 = sbr.rel (0) target = $region13
    $region12: #{tpu_custom_call.1} parent=1 // pred_region
      %36 = vsyncadd [#allocation6], 0
      %s37 = sshll.u32 %s2, 4
      %s38 = int_to_ptr.hbm [resolvable:$true] %s37
      %s39 = sshll.u32 [#allocation7], 4
      %s40 = int_to_ptr.vmem [resolvable:$true] %s39
      %45 = dma.hbm_to_vmem [thread:$0]  %s38, 256, %s40, [#allocation6], 128, 128, 8
    $region13: #{tpu_custom_call.1} parent=1 // pred_fallthru
      _
    // Predicated region
    $region14: #{tpu_custom_call.1} parent=1 // pred_check
      _
    $region15: #{tpu_custom_call.1} parent=1 // pred_check_branch
      %47 = sbr.rel (0) target = $region17
    $region16: #{tpu_custom_call.1} parent=1 // pred_region
      %49 = dma.done [#allocation3], 128
    $region17: #{tpu_custom_call.1} parent=1 // pred_fallthru
      _
    // Predicated region
    $region18: #{tpu_custom_call.1} parent=1 // pred_check
      _
    $region19: #{tpu_custom_call.1} parent=1 // pred_check_branch
      %51 = sbr.rel (0) target = $region21
    $region20: #{tpu_custom_call.1} parent=1 // pred_region
      %53 = dma.done [#allocation6], 16
    $region21: #{tpu_custom_call.1} parent=1 // pred_fallthru
      _
    // Predicated region
    $region22: #{tpu_custom_call.1} parent=1 // pred_check
      _
    $region23: #{tpu_custom_call.1} parent=1 // pred_check_branch
      %55 = sbr.rel (0) target = $region25
    $region24: #{tpu_custom_call.1} parent=1 // pred_region
      %57 = dma.done [#allocation6], 256
    $region25: #{tpu_custom_call.1} parent=1 // pred_fallthru
      _
    %v58 = vld [vmem:[#allocation2] sm:$0xff]
    %v59 = vld [vmem:[#allocation7] sm:$0xff]
    %v60 = vld [vmem:[#allocation7 + $0x8] sm:$0xff]
    %v61 = vld [vmem:[#allocation5] sm:$0x1]
    %v62 = vlaneseq
    %v63 = vshrl.u32 %v62, 7
    %v64 = vadd.s32 %v63, 8
    %v65 = vperm.slane %v61, 0
    %vm66 = vcmp.eq.s32.totalorder %v63, %v65
    %vm67 = vcmp.eq.s32.totalorder %v64, %v65
    %v68 = vsel %vm66, 1, 0
    %v69 = vsel %vm67, 1, 0
    %v70 = vcvt.s32.f32 %v68
    %v71 = vcvt.s32.f32 %v69
    %72 = vxpose.xlu0.b32.start [1/16] %v70, 128
    %73 = vxpose.xlu0.b32.cont [2/16] %v71, 128
    %74 = vxpose.xlu0.b32.cont [3/16] 0.0, 128
    %75 = vxpose.xlu0.b32.cont [4/16] 0.0, 128
    %76 = vxpose.xlu0.b32.cont [5/16] 0.0, 128
    %77 = vxpose.xlu0.b32.cont [6/16] 0.0, 128
    %78 = vxpose.xlu0.b32.cont [7/16] 0.0, 128
    %79 = vxpose.xlu0.b32.cont [8/16] 0.0, 128
    %80 = vxpose.xlu0.b32.cont [9/16] 0.0, 128
    %81 = vxpose.xlu0.b32.cont [10/16] 0.0, 128
    %82 = vxpose.xlu0.b32.cont [11/16] 0.0, 128
    %83 = vxpose.xlu0.b32.cont [12/16] 0.0, 128
    %84 = vxpose.xlu0.b32.cont [13/16] 0.0, 128
    %85 = vxpose.xlu0.b32.cont [14/16] 0.0, 128
    %86 = vxpose.xlu0.b32.cont [15/16] 0.0, 128
    %87 = vxpose.xlu0.b32.end [16/16] 0.0, 128
    %v88 = vpop.trf.xlu0
    %v89 = vpop.trf.xlu0
    %v90 = vpop.trf.xlu0
    %v91 = vpop.trf.xlu0
    %v92 = vpop.trf.xlu0
    %v93 = vpop.trf.xlu0
    %v94 = vpop.trf.xlu0
    %v95 = vpop.trf.xlu0
    %v96 = vpop.trf.xlu0
    %v97 = vpop.trf.xlu0
    %v98 = vpop.trf.xlu0
    %v99 = vpop.trf.xlu0
    %v100 = vpop.trf.xlu0
    %v101 = vpop.trf.xlu0
    %v102 = vpop.trf.xlu0
    %v103 = vpop.trf.xlu0
    %vm104 = vcmask 130048
    %v106 = vsel %vm104, %v88, 0
    %108 = vmatpush.msra.mxu0 0.0
    %109 = vmatpush.msra.mxu0 0.0
    %110 = vmatpush.msra.mxu0 0.0
    %111 = vmatpush.msra.mxu0 0.0
    %112 = vmatpush.msra.mxu0 0.0
    %113 = vmatpush.msra.mxu0 0.0
    %114 = vmatpush.msra.mxu0 0.0
    %115 = vmatpush.msra.mxu0 0.0
    %116 = vmatpush.msra.mxu0 0.0
    %117 = vmatpush.msra.mxu0 0.0
    %118 = vmatpush.msra.mxu0 0.0
    %119 = vmatpush.msra.mxu0 0.0
    %120 = vmatpush.msra.mxu0 0.0
    %121 = vmatpush.msra.mxu0 0.0
    %122 = vmatpush.msra.mxu0 %v60
    %123 = vmatpush.msra.mxu0 %v59
    %124 = vmatmul.f32.gmra.mxu0 %v106
    %v125 = vpop.f32.mrf.mxu0
    %v126 = vadd.f32 0.0, %v125
    %127 = vdwg.mxu0
    %v128 = vsub.f32 %v58, %v126
    %v129 = vmul.f32 %v128, %v128
    %vm130 = vcmask 261120
    %v131 = vsel %vm130, %v129, 0.0
    %132 = vadd.xlane.f32.xlu0 %v131
    %v133 = vpop.xlane.xlu0 %132
    %v134 = vmax.f32 %v133, 1e-12
    %v135 = vmin.f32 %v134, 1e+12
    %s136 = smul.u32 0, 8
    %v137 = vstv %s136
    %v138 = vadd.s32 %v137, %v63
    %vm139 = vcmp.lt.s32.totalorder %v138, 8
    %v140 = vsel %vm139, %v135, 0.0
    %vm141 = vcmask 7168
    %v142 = vsel %vm141, %v140, 0.0
    %143 = vadd.xlane.f32.xlu0 %v142
    %v144 = vpop.xlane.xlu0 %143
    %v145 = vrot.slane %v144, 4
    %v146 = vadd.f32 %v144, %v145
    %v147 = vrot.slane %v146, 2
    %v148 = vadd.f32 %v146, %v147
    %v149 = vrot.slane %v148, 1
    %v150 = vadd.f32 %v148, %v149
    %s151 = vtos %v150
    %v152 = vstv %s151
    %153 = vst [vmem:[#allocation8] sm:$0x1] %v152
    // Predicated region
    $region26: #{tpu_custom_call.1} parent=1 // pred_check
      _
    $region27: #{tpu_custom_call.1} parent=1 // pred_check_branch
      %155 = sbr.rel (0) target = $region29
    $region28: #{tpu_custom_call.1} parent=1 // pred_region
      %157 = vsyncadd [#allocation4], 0
      %s159 = sshll.u32 [#allocation8], 4
      %s160 = int_to_ptr.vmem [resolvable:$true] %s159
      %s161 = sshll.u32 %s3, 4
      %s162 = int_to_ptr.hbm [resolvable:$true] %s161
      %164 = dma.vmem_to_hbm [thread:$0]  %s160, 16, %s162, [#allocation4]
    $region29: #{tpu_custom_call.1} parent=1 // pred_fallthru
      _
    // Predicated region
    $region30: #{tpu_custom_call.1} parent=1 // pred_check
      _
    $region31: #{tpu_custom_call.1} parent=1 // pred_check_branch
      %166 = sbr.rel (0) target = $region33
    $region32: #{tpu_custom_call.1} parent=1 // pred_region
      %168 = dma.done [#allocation4], 16
    $region33: #{tpu_custom_call.1} parent=1 // pred_fallthru
      _
    %169 = vsyncpa [#allocation3], 1
    %170 = vsyncpa [#allocation6], 1
    %171 = vsyncpa [#allocation4], 1

</llo_original>
